<compile_context>
chip_gen: v7x
topology: tpu7x:2x2x1
jax: 0.10.0
libtpu: 0.0.40
codegen_flags: <defaults>
</compile_context>

<pallas_src>
import jax
import jax.numpy as jnp
from jax.experimental import pallas as pl
from jax.experimental.pallas import tpu as pltpu


# Batch tile on the lane axis. Multiple of 256 (fills v6e/v7x MXU columns,
# also a multiple of 128 for v5e); large enough to amortize per-step overhead,
# small enough (2 * ~0.5 MiB double-buffered) to be trivial for VMEM on all gens.
TB = 512


def toy_mlp_kernel(w1_ref, b1_ref, w2_ref, b2_ref, x_ref, o_ref):
    # x_ref : [10, TB]   (features x batch-tile, batch on lanes)
    # w1_ref: [10, 10]   (out, in)   b1_ref: [10, 1]
    # w2_ref: [ 5, 10]   (out, in)   b2_ref: [ 5, 1]
    # o_ref : [ 5, TB]
    # Biases are read once per invocation (no inner loop -> no repeated
    # broadcast_in_dim); the [N,1] shape broadcasts across the lane axis.
    b1 = b1_ref[...]
    b2 = b2_ref[...]

    # net1 + ReLU:  hT = relu(W1 @ xT + b1)
    h = jnp.dot(w1_ref[...], x_ref[...], preferred_element_type=jnp.float32)
    h = jnp.maximum(h + b1, 0.0)

    # net2:         yT = W2 @ hT + b2
    y = jnp.dot(w2_ref[...], h, preferred_element_type=jnp.float32)
    o_ref[...] = (y + b2).astype(o_ref.dtype)


def toy_model_forward(x, w1, b1, w2, b2, *, tb=TB):
    """Forward pass of ToyModel.

    x : [B, 10] float32
    w1: [10, 10] (out_features, in_features)  -- PyTorch layout
    b1: [10]
    w2: [5, 10]  (out_features, in_features)  -- PyTorch layout
    b2: [5]
    returns [B, 5]
    """
    B, in_features = x.shape
    out_features = w2.shape[0]

    # Layout plumbing (done once in the wrapper): batch -> lane axis, pad the
    # batch to a multiple of the lane tile.
    num_tiles = pl.cdiv(B, tb)
    b_pad = num_tiles * tb
    x_t = jnp.pad(x.T, ((0, 0), (0, b_pad - B)))          # [10, B_pad]

    y_t = pl.pallas_call(
        toy_mlp_kernel,
        out_shape=jax.ShapeDtypeStruct((out_features, b_pad), x.dtype),
        grid_spec=pltpu.PrefetchScalarGridSpec(
            num_scalar_prefetch=0,
            grid=(num_tiles,),
            in_specs=[
                # Weights / biases: same block every step -> stay resident.
                pl.BlockSpec((w1.shape[0], w1.shape[1]), lambda i: (0, 0)),
                pl.BlockSpec((w1.shape[0], 1), lambda i: (0, 0)),
                pl.BlockSpec((out_features, w2.shape[1]), lambda i: (0, 0)),
                pl.BlockSpec((out_features, 1), lambda i: (0, 0)),
                # x stream: tiled along the batch (lane) axis -> pipelined.
                pl.BlockSpec((in_features, tb), lambda i: (0, i)),
            ],
            out_specs=pl.BlockSpec((out_features, tb), lambda i: (0, i)),
        ),
        compiler_params=pltpu.CompilerParams(
            dimension_semantics=("parallel",),
        ),
    )(w1, b1.reshape(-1, 1), w2, b2.reshape(-1, 1), x_t)

    # Slice off the batch padding and restore [B, out_features].
    return y_t[:, :B].T


def init_params(key):
    """Deterministic init mimicking nn.Linear's U(-1/sqrt(fan_in), 1/sqrt(fan_in)).

    Weights are stored in PyTorch layout [out_features, in_features].
    """
    k1, k2, k3, k4 = jax.random.split(key, 4)
    bound1 = 1.0 / jnp.sqrt(10.0)
    bound2 = 1.0 / jnp.sqrt(10.0)
    w1 = jax.random.uniform(k1, (10, 10), jnp.float32, -bound1, bound1)
    b1 = jax.random.uniform(k2, (10,), jnp.float32, -bound1, bound1)
    w2 = jax.random.uniform(k3, (5, 10), jnp.float32, -bound2, bound2)
    b2 = jax.random.uniform(k4, (5,), jnp.float32, -bound2, bound2)
    return w1, b1, w2, b2


if __name__ == "__main__":
    key = jax.random.PRNGKey(0)
    k_x, k_p = jax.random.split(key)

    B = 8
    x = jax.random.normal(k_x, (B, 10), dtype=jnp.float32)
    w1, b1, w2, b2 = init_params(k_p)

    out = toy_model_forward(x, w1, b1, w2, b2)
    jax.block_until_ready(out)

    # Pure-JAX reference (identical semantics to the PyTorch forward:
    # net2(relu(net1(x))) with W in [out, in] layout -> x @ W.T + b).
    ref = jnp.maximum(x @ w1.T + b1, 0.0) @ w2.T + b2
    assert out.shape == (B, 5)
    assert jnp.allclose(out, ref, atol=1e-5, rtol=1e-5), (
        f"max abs err = {jnp.max(jnp.abs(out - ref))}"
    )

    print("KERNEL_OK")
</pallas_src>

<mosaic_0001>
module attributes {stable_mosaic.version = 11 : i64} {
  func.func @toy_mlp_kernel(%arg0: i32, %arg1: memref<10x10xf32, #tpu.memory_space<vmem>>, %arg2: memref<10x1xf32, #tpu.memory_space<vmem>>, %arg3: memref<5x10xf32, #tpu.memory_space<vmem>>, %arg4: memref<5x1xf32, #tpu.memory_space<vmem>>, %arg5: memref<10x512xf32, #tpu.memory_space<vmem>>, %arg6: memref<5x512xf32, #tpu.memory_space<vmem>>) attributes {dimension_semantics = [#tpu.dimension_semantics<parallel>], iteration_bounds = array<i64: 1>, scalar_prefetch = 0 : i64, scratch_operands = 0 : i64, tpu.core_type = #tpu.core_type<tc>, window_params = [{pipeline_mode = #tpu.pipeline_mode<synchronous>, transform_indices = @transform_0, window_bounds = array<i64: 10, 10>}, {pipeline_mode = #tpu.pipeline_mode<synchronous>, transform_indices = @transform_1, window_bounds = array<i64: 10, 1>}, {pipeline_mode = #tpu.pipeline_mode<synchronous>, transform_indices = @transform_2, window_bounds = array<i64: 5, 10>}, {pipeline_mode = #tpu.pipeline_mode<synchronous>, transform_indices = @transform_3, window_bounds = array<i64: 5, 1>}, {transform_indices = @transform_4, window_bounds = array<i64: 10, 512>}, {transform_indices = @transform_5, window_bounds = array<i64: 5, 512>}]} {
    %c0 = arith.constant 0 : index
    %c0_0 = arith.constant 0 : index
    %0 = vector.load %arg2[%c0, %c0_0] : memref<10x1xf32, #tpu.memory_space<vmem>>, vector<10x1xf32>
    %c0_1 = arith.constant 0 : index
    %c0_2 = arith.constant 0 : index
    %1 = vector.load %arg4[%c0_1, %c0_2] : memref<5x1xf32, #tpu.memory_space<vmem>>, vector<5x1xf32>
    %c0_3 = arith.constant 0 : index
    %c0_4 = arith.constant 0 : index
    %2 = vector.load %arg1[%c0_3, %c0_4] : memref<10x10xf32, #tpu.memory_space<vmem>>, vector<10x10xf32>
    %c0_5 = arith.constant 0 : index
    %c0_6 = arith.constant 0 : index
    %3 = vector.load %arg5[%c0_5, %c0_6] : memref<10x512xf32, #tpu.memory_space<vmem>>, vector<10x512xf32>
    %cst = arith.constant dense<0.000000e+00> : vector<10x512xf32>
    %4 = tpu.matmul %2, %3, %cst {dimension_numbers = #tpu.dot_dimension_numbers<[1], [0], [0], [1], [0, 0, 1, 1], [], []>} : vector<10x10xf32>, vector<10x512xf32>, vector<10x512xf32> -> vector<10x512xf32>
    %5 = vector.broadcast %0 : vector<10x1xf32> to vector<10x512xf32>
    %6 = arith.addf %4, %5 : vector<10x512xf32>
    %cst_7 = arith.constant 0.000000e+00 : f32
    %7 = vector.broadcast %cst_7 : f32 to vector<10x512xf32>
    %8 = arith.maximumf %6, %7 : vector<10x512xf32>
    %c0_8 = arith.constant 0 : index
    %c0_9 = arith.constant 0 : index
    %9 = vector.load %arg3[%c0_8, %c0_9] : memref<5x10xf32, #tpu.memory_space<vmem>>, vector<5x10xf32>
    %cst_10 = arith.constant dense<0.000000e+00> : vector<5x512xf32>
    %10 = tpu.matmul %9, %8, %cst_10 {dimension_numbers = #tpu.dot_dimension_numbers<[1], [0], [0], [1], [0, 0, 1, 1], [], []>} : vector<5x10xf32>, vector<10x512xf32>, vector<5x512xf32> -> vector<5x512xf32>
    %11 = vector.broadcast %1 : vector<5x1xf32> to vector<5x512xf32>
    %12 = arith.addf %10, %11 : vector<5x512xf32>
    %c0_11 = arith.constant 0 : index
    %c0_12 = arith.constant 0 : index
    %13 = vector.load %arg6[%c0_11, %c0_12] : memref<5x512xf32, #tpu.memory_space<vmem>>, vector<5x512xf32>
    tpu.vector_store %arg6[%c0_11, %c0_12], %12 {strides = array<i32>} : memref<5x512xf32, #tpu.memory_space<vmem>>, vector<5x512xf32>,
    return
  }
  func.func @transform_0(%arg0: i32) -> (i32, i32) {
    %c0_i32 = arith.constant 0 : i32
    %c0_i32_0 = arith.constant 0 : i32
    %c0_i32_1 = arith.constant 0 : i32
    return %c0_i32, %c0_i32_0 : i32, i32
  }
  func.func @transform_1(%arg0: i32) -> (i32, i32) {
    %c0_i32 = arith.constant 0 : i32
    %c0_i32_0 = arith.constant 0 : i32
    %c0_i32_1 = arith.constant 0 : i32
    return %c0_i32, %c0_i32_0 : i32, i32
  }
  func.func @transform_2(%arg0: i32) -> (i32, i32) {
    %c0_i32 = arith.constant 0 : i32
    %c0_i32_0 = arith.constant 0 : i32
    %c0_i32_1 = arith.constant 0 : i32
    return %c0_i32, %c0_i32_0 : i32, i32
  }
  func.func @transform_3(%arg0: i32) -> (i32, i32) {
    %c0_i32 = arith.constant 0 : i32
    %c0_i32_0 = arith.constant 0 : i32
    %c0_i32_1 = arith.constant 0 : i32
    return %c0_i32, %c0_i32_0 : i32, i32
  }
  func.func @transform_4(%arg0: i32) -> (i32, i32) {
    %c0_i32 = arith.constant 0 : i32
    %c0_i32_0 = arith.constant 0 : i32
    return %c0_i32, %arg0 : i32, i32
  }
  func.func @transform_5(%arg0: i32) -> (i32, i32) {
    %c0_i32 = arith.constant 0 : i32
    %c0_i32_0 = arith.constant 0 : i32
    return %c0_i32, %arg0 : i32, i32
  }
}

</mosaic_0001>

<llo_original>
// kernel: tpu_custom_call.1
$region0: #{tpu_custom_call.1}
  #allocation0 [shape = 'u32[]', space=smem, size = 0x4, offset = 0x4, fixed_abs, tag = 'smem constant byte address 0x4 - core index']
  #allocation1 [shape = 'u32[144,128]{1,0:T(1,128)}', space=vmem, size = 0x12000, scoped, tag = 'internal scratch']
  %s0 = inlined_call_operand.vmem [shape: f32[10,10], index: 0, kind: input, shape index: {}]
  %s1 = inlined_call_operand.vmem [shape: f32[10,1], index: 1, kind: input, shape index: {}]
  %s2 = inlined_call_operand.vmem [shape: f32[5,10], index: 2, kind: input, shape index: {}]
  %s3 = inlined_call_operand.vmem [shape: f32[5,1], index: 3, kind: input, shape index: {}]
  %s4 = inlined_call_operand.hbm [shape: f32[10,512], index: 4, kind: input, shape index: {}]
  %s5 = inlined_call_operand.hbm [shape: f32[5,512], index: 5, kind: output, shape index: {}]
  %s6 = sld [smem:[#allocation0]]
  $region34: #{tpu_custom_call.1} parent=0
    _
  %s8 = ssub.s32 1, %s6
  %s9 = scalar_select 0, %s8, %s6
  $region1: #{tpu_custom_call.1} parent=0
    #allocation2 [shape = 'u8[32768]{0}', space=vmem, size = 0x8000, scoped, tag = 'input window, operand 4, single buffered']
    #allocation3 [shape = 's32[1]{0}', space=sflag, size = 0x4, scoped, tag = 'scoped memory for tpu_custom_call.1']
    #allocation4 [shape = 's32[1]{0}', space=sflag, size = 0x4, scoped, tag = 'scoped memory for tpu_custom_call.1']
    #allocation5 [shape = 'u8[16384]{0}', space=vmem, size = 0x4000, scoped, tag = 'output window, operand 0, single buffered']
    %10 = vsyncpa [#allocation3], 0
    %11 = vsyncpa [#allocation4], 0
    // Predicated region
    $region2: #{tpu_custom_call.1} parent=1 // pred_check
      _
    $region3: #{tpu_custom_call.1} parent=1 // pred_check_branch
      %13 = sbr.rel (0) target = $region5
    $region4: #{tpu_custom_call.1} parent=1 // pred_region
      _
    $region5: #{tpu_custom_call.1} parent=1 // pred_fallthru
      _
    // Predicated region
    $region6: #{tpu_custom_call.1} parent=1 // pred_check
      _
    $region7: #{tpu_custom_call.1} parent=1 // pred_check_branch
      %15 = sbr.rel (0) target = $region9
    $region8: #{tpu_custom_call.1} parent=1 // pred_region
      _
    $region9: #{tpu_custom_call.1} parent=1 // pred_fallthru
      _
    // Predicated region
    $region10: #{tpu_custom_call.1} parent=1 // pred_check
      _
    $region11: #{tpu_custom_call.1} parent=1 // pred_check_branch
      %17 = sbr.rel (0) target = $region13
    $region12: #{tpu_custom_call.1} parent=1 // pred_region
      _
    $region13: #{tpu_custom_call.1} parent=1 // pred_fallthru
      _
    // Predicated region
    $region14: #{tpu_custom_call.1} parent=1 // pred_check
      _
    $region15: #{tpu_custom_call.1} parent=1 // pred_check_branch
      %19 = sbr.rel (0) target = $region17
    $region16: #{tpu_custom_call.1} parent=1 // pred_region
      _
    $region17: #{tpu_custom_call.1} parent=1 // pred_fallthru
      _
    // Predicated region
    $region18: #{tpu_custom_call.1} parent=1 // pred_check
      _
    $region19: #{tpu_custom_call.1} parent=1 // pred_check_branch
      %21 = sbr.rel (0) target = $region21
    $region20: #{tpu_custom_call.1} parent=1 // pred_region
      %s23 = ssub.s32 1024, 1024
      %24 = vsyncadd [#allocation3], %s23
      %s25 = sshll.u32 [#allocation2], 4
      %s26 = int_to_ptr.vmem [resolvable:$true] %s25
      %31 = dma.hbm_to_vmem [thread:$0]  %s4, 1024, %s26, [#allocation3], 512, 512, 32
    $region21: #{tpu_custom_call.1} parent=1 // pred_fallthru
      _
    // Predicated region
    $region22: #{tpu_custom_call.1} parent=1 // pred_check
      _
    $region23: #{tpu_custom_call.1} parent=1 // pred_check_branch
      %33 = sbr.rel (0) target = $region25
    $region24: #{tpu_custom_call.1} parent=1 // pred_region
      %34 = dma.done [#allocation3], 1024
    $region25: #{tpu_custom_call.1} parent=1 // pred_fallthru
      _
    %v35 = vld [vmem:[%s1] sm:$0xff]
    %v36 = vld [vmem:[%s1 + $0x8] sm:$0x3]
    %v37 = vld [vmem:[%s3] sm:$0x1f]
    %v38 = vld [vmem:[%s0] sm:$0xff]
    %v39 = vld [vmem:[%s0 + $0x8] sm:$0x3]
    %v40 = vld [vmem:[#allocation2] sm:$0xff]
    %v41 = vld [vmem:[#allocation2 + $0x8] sm:$0xff]
    %v42 = vld [vmem:[#allocation2 + $0x10] sm:$0xff]
    %v43 = vld [vmem:[#allocation2 + $0x18] sm:$0xff]
    %v44 = vld [vmem:[#allocation2 + $0x20] sm:$0x3]
    %v45 = vld [vmem:[#allocation2 + $0x28] sm:$0x3]
    %v46 = vld [vmem:[#allocation2 + $0x30] sm:$0x3]
    %v47 = vld [vmem:[#allocation2 + $0x38] sm:$0x3]
    %49 = vset.pattern.permute.xlu0 0
    %50 = vperm.xlu0 %49, %v35
    %v51 = vpop.permute.xlu0 %50
    %54 = vset.pattern.permute.xlu0 0
    %55 = vperm.xlu0 %54, %v36
    %v56 = vpop.permute.xlu0 %55
    %vm58 = vcmask 80896
    %v60 = vsel %vm58, %v38, 0
    %v63 = vsel %vm58, %v39, 0
    %vm65 = vcmask 1041408
    %v67 = vsel %vm65, %v44, 0
    %v70 = vsel %vm65, %v45, 0
    %v73 = vsel %vm65, %v46, 0
    %v76 = vsel %vm65, %v47, 0
    %78 = vmatprep.subr.mxu0 %v41
    %79 = vmatpush1.msra.mxu0 %v40
    %80 = vmatprep.subr.mxu0 %v70
    %81 = vmatpush1.msra.mxu0 %v67
    %82 = vmatprep.subr.mxu0 0.0
    %83 = vmatpush1.msra.mxu0 0.0
    %84 = vmatprep.subr.mxu0 0.0
    %85 = vmatpush1.msra.mxu0 0.0
    %86 = vmatprep.subr.mxu0 0.0
    %87 = vmatpush1.msra.mxu0 0.0
    %88 = vmatprep.subr.mxu0 0.0
    %89 = vmatpush1.msra.mxu0 0.0
    %90 = vmatprep.subr.mxu0 0.0
    %91 = vmatpush1.msra.mxu0 0.0
    %92 = vmatprep.subr.mxu0 0.0
    %93 = vmatpush1.msra.mxu0 0.0
    %94 = vmatprep.subr.mxu0 0.0
    %95 = vmatpush1.msra.mxu0 0.0
    %96 = vmatprep.subr.mxu0 0.0
    %97 = vmatpush1.msra.mxu0 0.0
    %98 = vmatprep.subr.mxu0 0.0
    %99 = vmatpush1.msra.mxu0 0.0
    %100 = vmatprep.subr.mxu0 0.0
    %101 = vmatpush1.msra.mxu0 0.0
    %102 = vmatprep.subr.mxu0 0.0
    %103 = vmatpush1.msra.mxu0 0.0
    %104 = vmatprep.subr.mxu0 0.0
    %105 = vmatpush1.msra.mxu0 0.0
    %106 = vmatprep.subr.mxu0 0.0
    %107 = vmatpush1.msra.mxu0 0.0
    %108 = vmatprep.subr.mxu0 0.0
    %109 = vmatpush1.msra.mxu0 0.0
    %110 = vmatprep.subr.mxu0 0.0
    %111 = vmatpush1.msra.mxu0 0.0
    %112 = vmatprep.subr.mxu0 0.0
    %113 = vmatpush1.msra.mxu0 0.0
    %114 = vmatprep.subr.mxu0 0.0
    %115 = vmatpush1.msra.mxu0 0.0
    %116 = vmatprep.subr.mxu0 0.0
    %117 = vmatpush1.msra.mxu0 0.0
    %118 = vmatprep.subr.mxu0 0.0
    %119 = vmatpush1.msra.mxu0 0.0
    %120 = vmatprep.subr.mxu0 0.0
    %121 = vmatpush1.msra.mxu0 0.0
    %122 = vmatprep.subr.mxu0 0.0
    %123 = vmatpush1.msra.mxu0 0.0
    %124 = vmatprep.subr.mxu0 0.0
    %125 = vmatpush1.msra.mxu0 0.0
    %126 = vmatprep.subr.mxu0 0.0
    %127 = vmatpush1.msra.mxu0 0.0
    %128 = vmatprep.subr.mxu0 0.0
    %129 = vmatpush1.msra.mxu0 0.0
    %130 = vmatprep.subr.mxu0 0.0
    %131 = vmatpush1.msra.mxu0 0.0
    %132 = vmatprep.subr.mxu0 0.0
    %133 = vmatpush1.msra.mxu0 0.0
    %134 = vmatprep.subr.mxu0 0.0
    %135 = vmatpush1.msra.mxu0 0.0
    %136 = vmatprep.subr.mxu0 0.0
    %137 = vmatpush1.msra.mxu0 0.0
    %138 = vmatprep.subr.mxu0 0.0
    %139 = vmatpush1.msra.mxu0 0.0
    %140 = vmatprep.subr.mxu0 0.0
    %141 = vmatpush1.msra.mxu0 0.0
    %142 = vmatprep.mubr.f32.mxu0 0.0
    %143 = vmatmul.mubr.f32.gmra.mrb[0].mxu0 %v60
    %v144 = vpop.f32.mrb[0].mxu0
    %v145 = vadd.f32 %v51, %v144
    %v146 = vpop.f32.mrb[0].mxu0
    %v147 = vadd.f32 %v51, %v146
    %148 = vmatprep.mubr.f32.mxu0 0.0
    %149 = vmatmul.mubr.f32.gmra.mrb[0].mxu0 %v63
    %v150 = vpop.f32.mrb[0].mxu0
    %v151 = vadd.f32 %v56, %v150
    %v152 = vpop.f32.mrb[0].mxu0
    %v153 = vadd.f32 %v56, %v152
    %154 = vdwg.mxu0
    %155 = vmatprep.subr.mxu0 %v43
    %156 = vmatpush1.msra.mxu0 %v42
    %157 = vmatprep.subr.mxu0 %v76
    %158 = vmatpush1.msra.mxu0 %v73
    %159 = vmatprep.subr.mxu0 0.0
    %160 = vmatpush1.msra.mxu0 0.0
    %161 = vmatprep.subr.mxu0 0.0
    %162 = vmatpush1.msra.mxu0 0.0
    %163 = vmatprep.subr.mxu0 0.0
    %164 = vmatpush1.msra.mxu0 0.0
    %165 = vmatprep.subr.mxu0 0.0
    %166 = vmatpush1.msra.mxu0 0.0
    %167 = vmatprep.subr.mxu0 0.0
    %168 = vmatpush1.msra.mxu0 0.0
    %169 = vmatprep.subr.mxu0 0.0
    %170 = vmatpush1.msra.mxu0 0.0
    %171 = vmatprep.subr.mxu0 0.0
    %172 = vmatpush1.msra.mxu0 0.0
    %173 = vmatprep.subr.mxu0 0.0
    %174 = vmatpush1.msra.mxu0 0.0
    %175 = vmatprep.subr.mxu0 0.0
    %176 = vmatpush1.msra.mxu0 0.0
    %177 = vmatprep.subr.mxu0 0.0
    %178 = vmatpush1.msra.mxu0 0.0
    %179 = vmatprep.subr.mxu0 0.0
    %180 = vmatpush1.msra.mxu0 0.0
    %181 = vmatprep.subr.mxu0 0.0
    %182 = vmatpush1.msra.mxu0 0.0
    %183 = vmatprep.subr.mxu0 0.0
    %184 = vmatpush1.msra.mxu0 0.0
    %185 = vmatprep.subr.mxu0 0.0
    %186 = vmatpush1.msra.mxu0 0.0
    %187 = vmatprep.subr.mxu0 0.0
    %188 = vmatpush1.msra.mxu0 0.0
    %189 = vmatprep.subr.mxu0 0.0
    %190 = vmatpush1.msra.mxu0 0.0
    %191 = vmatprep.subr.mxu0 0.0
    %192 = vmatpush1.msra.mxu0 0.0
    %193 = vmatprep.subr.mxu0 0.0
    %194 = vmatpush1.msra.mxu0 0.0
    %195 = vmatprep.subr.mxu0 0.0
    %196 = vmatpush1.msra.mxu0 0.0
    %197 = vmatprep.subr.mxu0 0.0
    %198 = vmatpush1.msra.mxu0 0.0
    %199 = vmatprep.subr.mxu0 0.0
    %200 = vmatpush1.msra.mxu0 0.0
    %201 = vmatprep.subr.mxu0 0.0
    %202 = vmatpush1.msra.mxu0 0.0
    %203 = vmatprep.subr.mxu0 0.0
    %204 = vmatpush1.msra.mxu0 0.0
    %205 = vmatprep.subr.mxu0 0.0
    %206 = vmatpush1.msra.mxu0 0.0
    %207 = vmatprep.subr.mxu0 0.0
    %208 = vmatpush1.msra.mxu0 0.0
    %209 = vmatprep.subr.mxu0 0.0
    %210 = vmatpush1.msra.mxu0 0.0
    %211 = vmatprep.subr.mxu0 0.0
    %212 = vmatpush1.msra.mxu0 0.0
    %213 = vmatprep.subr.mxu0 0.0
    %214 = vmatpush1.msra.mxu0 0.0
    %215 = vmatprep.subr.mxu0 0.0
    %216 = vmatpush1.msra.mxu0 0.0
    %217 = vmatprep.subr.mxu0 0.0
    %218 = vmatpush1.msra.mxu0 0.0
    %219 = vmatprep.mubr.f32.mxu0 0.0
    %220 = vmatmul.mubr.f32.gmra.mrb[0].mxu0 %v60
    %v221 = vpop.f32.mrb[0].mxu0
    %v222 = vadd.f32 %v51, %v221
    %v223 = vpop.f32.mrb[0].mxu0
    %v224 = vadd.f32 %v51, %v223
    %225 = vmatprep.mubr.f32.mxu0 0.0
    %226 = vmatmul.mubr.f32.gmra.mrb[0].mxu0 %v63
    %v227 = vpop.f32.mrb[0].mxu0
    %v228 = vadd.f32 %v56, %v227
    %v229 = vpop.f32.mrb[0].mxu0
    %v230 = vadd.f32 %v56, %v229
    %231 = vdwg.mxu0
    %v232 = vmax.f32 %v145, 0.0
    %v233 = vmax.f32 %v147, 0.0
    %v234 = vmax.f32 %v222, 0.0
    %v235 = vmax.f32 %v224, 0.0
    %v236 = vmax.f32 %v151, 0.0
    %v237 = vmax.f32 %v153, 0.0
    %v238 = vmax.f32 %v228, 0.0
    %v239 = vmax.f32 %v230, 0.0
    %v240 = vld [vmem:[%s2] sm:$0x1f]
    %242 = vset.pattern.permute.xlu0 0
    %243 = vperm.xlu0 %242, %v37
    %v244 = vpop.permute.xlu0 %243
    %v247 = vsel %vm58, %v240, 0
    %v250 = vsel %vm65, %v236, 0
    %v253 = vsel %vm65, %v237, 0
    %v256 = vsel %vm65, %v238, 0
    %v259 = vsel %vm65, %v239, 0
    %261 = vmatprep.subr.mxu0 %v233
    %262 = vmatpush1.msra.mxu0 %v232
    %263 = vmatprep.subr.mxu0 %v253
    %264 = vmatpush1.msra.mxu0 %v250
    %265 = vmatprep.subr.mxu0 0.0
    %266 = vmatpush1.msra.mxu0 0.0
    %267 = vmatprep.subr.mxu0 0.0
    %268 = vmatpush1.msra.mxu0 0.0
    %269 = vmatprep.subr.mxu0 0.0
    %270 = vmatpush1.msra.mxu0 0.0
    %271 = vmatprep.subr.mxu0 0.0
    %272 = vmatpush1.msra.mxu0 0.0
    %273 = vmatprep.subr.mxu0 0.0
    %274 = vmatpush1.msra.mxu0 0.0
    %275 = vmatprep.subr.mxu0 0.0
    %276 = vmatpush1.msra.mxu0 0.0
    %277 = vmatprep.subr.mxu0 0.0
    %278 = vmatpush1.msra.mxu0 0.0
    %279 = vmatprep.subr.mxu0 0.0
    %280 = vmatpush1.msra.mxu0 0.0
    %281 = vmatprep.subr.mxu0 0.0
    %282 = vmatpush1.msra.mxu0 0.0
    %283 = vmatprep.subr.mxu0 0.0
    %284 = vmatpush1.msra.mxu0 0.0
    %285 = vmatprep.subr.mxu0 0.0
    %286 = vmatpush1.msra.mxu0 0.0
    %287 = vmatprep.subr.mxu0 0.0
    %288 = vmatpush1.msra.mxu0 0.0
    %289 = vmatprep.subr.mxu0 0.0
    %290 = vmatpush1.msra.mxu0 0.0
    %291 = vmatprep.subr.mxu0 0.0
    %292 = vmatpush1.msra.mxu0 0.0
    %293 = vmatprep.subr.mxu0 0.0
    %294 = vmatpush1.msra.mxu0 0.0
    %295 = vmatprep.subr.mxu0 0.0
    %296 = vmatpush1.msra.mxu0 0.0
    %297 = vmatprep.subr.mxu0 0.0
    %298 = vmatpush1.msra.mxu0 0.0
    %299 = vmatprep.subr.mxu0 0.0
    %300 = vmatpush1.msra.mxu0 0.0
    %301 = vmatprep.subr.mxu0 0.0
    %302 = vmatpush1.msra.mxu0 0.0
    %303 = vmatprep.subr.mxu0 0.0
    %304 = vmatpush1.msra.mxu0 0.0
    %305 = vmatprep.subr.mxu0 0.0
    %306 = vmatpush1.msra.mxu0 0.0
    %307 = vmatprep.subr.mxu0 0.0
    %308 = vmatpush1.msra.mxu0 0.0
    %309 = vmatprep.subr.mxu0 0.0
    %310 = vmatpush1.msra.mxu0 0.0
    %311 = vmatprep.subr.mxu0 0.0
    %312 = vmatpush1.msra.mxu0 0.0
    %313 = vmatprep.subr.mxu0 0.0
    %314 = vmatpush1.msra.mxu0 0.0
    %315 = vmatprep.subr.mxu0 0.0
    %316 = vmatpush1.msra.mxu0 0.0
    %317 = vmatprep.subr.mxu0 0.0
    %318 = vmatpush1.msra.mxu0 0.0
    %319 = vmatprep.subr.mxu0 0.0
    %320 = vmatpush1.msra.mxu0 0.0
    %321 = vmatprep.subr.mxu0 0.0
    %322 = vmatpush1.msra.mxu0 0.0
    %323 = vmatprep.subr.mxu0 0.0
    %324 = vmatpush1.msra.mxu0 0.0
    %325 = vmatprep.mubr.f32.mxu0 0.0
    %326 = vmatmul.mubr.f32.gmra.mrb[0].mxu0 %v247
    %v327 = vpop.f32.mrb[0].mxu0
    %v328 = vadd.f32 %v244, %v327
    %v329 = vpop.f32.mrb[0].mxu0
    %v330 = vadd.f32 %v244, %v329
    %331 = vdwg.mxu0
    %332 = vmatprep.subr.mxu0 %v235
    %333 = vmatpush1.msra.mxu0 %v234
    %334 = vmatprep.subr.mxu0 %v259
    %335 = vmatpush1.msra.mxu0 %v256
    %336 = vmatprep.subr.mxu0 0.0
    %337 = vmatpush1.msra.mxu0 0.0
    %338 = vmatprep.subr.mxu0 0.0
    %339 = vmatpush1.msra.mxu0 0.0
    %340 = vmatprep.subr.mxu0 0.0
    %341 = vmatpush1.msra.mxu0 0.0
    %342 = vmatprep.subr.mxu0 0.0
    %343 = vmatpush1.msra.mxu0 0.0
    %344 = vmatprep.subr.mxu0 0.0
    %345 = vmatpush1.msra.mxu0 0.0
    %346 = vmatprep.subr.mxu0 0.0
    %347 = vmatpush1.msra.mxu0 0.0
    %348 = vmatprep.subr.mxu0 0.0
    %349 = vmatpush1.msra.mxu0 0.0
    %350 = vmatprep.subr.mxu0 0.0
    %351 = vmatpush1.msra.mxu0 0.0
    %352 = vmatprep.subr.mxu0 0.0
    %353 = vmatpush1.msra.mxu0 0.0
    %354 = vmatprep.subr.mxu0 0.0
    %355 = vmatpush1.msra.mxu0 0.0
    %356 = vmatprep.subr.mxu0 0.0
    %357 = vmatpush1.msra.mxu0 0.0
    %358 = vmatprep.subr.mxu0 0.0
    %359 = vmatpush1.msra.mxu0 0.0
    %360 = vmatprep.subr.mxu0 0.0
    %361 = vmatpush1.msra.mxu0 0.0
    %362 = vmatprep.subr.mxu0 0.0
    %363 = vmatpush1.msra.mxu0 0.0
    %364 = vmatprep.subr.mxu0 0.0
    %365 = vmatpush1.msra.mxu0 0.0
    %366 = vmatprep.subr.mxu0 0.0
    %367 = vmatpush1.msra.mxu0 0.0
    %368 = vmatprep.subr.mxu0 0.0
    %369 = vmatpush1.msra.mxu0 0.0
    %370 = vmatprep.subr.mxu0 0.0
    %371 = vmatpush1.msra.mxu0 0.0
    %372 = vmatprep.subr.mxu0 0.0
    %373 = vmatpush1.msra.mxu0 0.0
    %374 = vmatprep.subr.mxu0 0.0
    %375 = vmatpush1.msra.mxu0 0.0
    %376 = vmatprep.subr.mxu0 0.0
    %377 = vmatpush1.msra.mxu0 0.0
    %378 = vmatprep.subr.mxu0 0.0
    %379 = vmatpush1.msra.mxu0 0.0
    %380 = vmatprep.subr.mxu0 0.0
    %381 = vmatpush1.msra.mxu0 0.0
    %382 = vmatprep.subr.mxu0 0.0
    %383 = vmatpush1.msra.mxu0 0.0
    %384 = vmatprep.subr.mxu0 0.0
    %385 = vmatpush1.msra.mxu0 0.0
    %386 = vmatprep.subr.mxu0 0.0
    %387 = vmatpush1.msra.mxu0 0.0
    %388 = vmatprep.subr.mxu0 0.0
    %389 = vmatpush1.msra.mxu0 0.0
    %390 = vmatprep.subr.mxu0 0.0
    %391 = vmatpush1.msra.mxu0 0.0
    %392 = vmatprep.subr.mxu0 0.0
    %393 = vmatpush1.msra.mxu0 0.0
    %394 = vmatprep.subr.mxu0 0.0
    %395 = vmatpush1.msra.mxu0 0.0
    %396 = vmatprep.mubr.f32.mxu0 0.0
    %397 = vmatmul.mubr.f32.gmra.mrb[0].mxu0 %v247
    %v398 = vpop.f32.mrb[0].mxu0
    %v399 = vadd.f32 %v244, %v398
    %v400 = vpop.f32.mrb[0].mxu0
    %v401 = vadd.f32 %v244, %v400
    %402 = vdwg.mxu0
    %403 = vst [vmem:[#allocation5] sm:$0x1f] %v328
    %404 = vst [vmem:[#allocation5 + $0x8] sm:$0x1f] %v330
    %405 = vst [vmem:[#allocation5 + $0x10] sm:$0x1f] %v399
    %406 = vst [vmem:[#allocation5 + $0x18] sm:$0x1f] %v401
    // Predicated region
    $region26: #{tpu_custom_call.1} parent=1 // pred_check
      _
    $region27: #{tpu_custom_call.1} parent=1 // pred_check_branch
      %408 = sbr.rel (0) target = $region29
    $region28: #{tpu_custom_call.1} parent=1 // pred_region
      %s410 = ssub.s32 512, 512
      %411 = vsyncadd [#allocation4], %s410
      %s413 = sshll.u32 [#allocation5], 4
      %s414 = int_to_ptr.vmem [resolvable:$true] %s413
      %416 = dma.vmem_to_hbm [thread:$0]  %s414, 512, %s5, [#allocation4]
    $region29: #{tpu_custom_call.1} parent=1 // pred_fallthru
      _
    // Predicated region
    $region30: #{tpu_custom_call.1} parent=1 // pred_check
      _
    $region31: #{tpu_custom_call.1} parent=1 // pred_check_branch
      %418 = sbr.rel (0) target = $region33
    $region32: #{tpu_custom_call.1} parent=1 // pred_region
      %419 = dma.done [#allocation4], 512
    $region33: #{tpu_custom_call.1} parent=1 // pred_fallthru
      _
    %420 = vsyncpa [#allocation3], 1
    %421 = vsyncpa [#allocation4], 1

</llo_original>
